<compile_context>
chip_gen: v7x
topology: tpu7x:2x2x1
jax: 0.10.0
libtpu: 0.0.40
codegen_flags: <defaults>
</compile_context>

<pallas_src>
import functools

import jax
import jax.numpy as jnp
from jax.experimental import pallas as pl
from jax.experimental.pallas import tpu as pltpu

NUM_STATE = 8      # state_size
NUM_ACTION = 4     # action_size
H1 = 128
H2 = 256


def _cdiv(a, b):
    return -(-a // b)


def _round_up(x, m):
    return ((x + m - 1) // m) * m


def policy_mlp_kernel(x_ref, w1_ref, b1_ref, w2_ref, b2_ref, w3_ref, b3_ref, o_ref):
    # x tile: (TB, NUM_STATE) f32; weights bf16 (MXU); biases f32.
    x = x_ref[...].astype(jnp.bfloat16)

    # linear1 + relu  (MXU bf16 operands, f32 accumulate; elementwise in f32)
    h1 = jnp.dot(x, w1_ref[...], preferred_element_type=jnp.float32) + b1_ref[...]
    h1 = jnp.maximum(h1, 0.0)

    # linear2 + relu
    h2 = jnp.dot(h1.astype(jnp.bfloat16), w2_ref[...],
                 preferred_element_type=jnp.float32) + b2_ref[...]
    h2 = jnp.maximum(h2, 0.0)

    # linear4 (output head, narrow: NUM_ACTION lanes)
    logits = jnp.dot(h2.astype(jnp.bfloat16), w3_ref[...],
                     preferred_element_type=jnp.float32) + b3_ref[...]

    # softmax over the action dimension; exact divide so rows sum to 1.
    m = jnp.max(logits, axis=-1, keepdims=True)
    e = jnp.exp(logits - m)
    denom = jnp.sum(e, axis=-1, keepdims=True)
    o_ref[...] = e / denom


def prepare_params(params):
    """One-time conversion: bf16 MXU weights, f32 biases (hoisted out of forward)."""
    w1, b1, w2, b2, w3, b3 = params
    return (w1.astype(jnp.bfloat16), b1,
            w2.astype(jnp.bfloat16), b2,
            w3.astype(jnp.bfloat16), b3)


@functools.partial(jax.jit, static_argnames=("block_b",))
def policy_forward(x, prepared, *, block_b=2048):
    w1b, b1, w2b, b2, w3b, b3 = prepared
    B = x.shape[0]

    # Batch tile: large enough to amortize per-step overhead (~0.35 us/step),
    # but capped so the grid has >= 2 steps (v7x can split the "parallel"
    # axis across its two TensorCores).  Multiple of 8 (sublane).
    TB = min(block_b, max(_round_up(_cdiv(B, 2), 8), 8))
    grid = (_cdiv(B, TB),)   # partial last block OK: rows are independent

    out = pl.pallas_call(
        policy_mlp_kernel,
        out_shape=jax.ShapeDtypeStruct((B, NUM_ACTION), jnp.float32),
        grid=grid,
        in_specs=[
            pl.BlockSpec((TB, NUM_STATE), lambda i: (i, 0)),    # x: tiled over batch
            pl.BlockSpec((NUM_STATE, H1), lambda i: (0, 0)),    # W1: VMEM-resident
            pl.BlockSpec((1, H1),         lambda i: (0, 0)),    # b1
            pl.BlockSpec((H1, H2),        lambda i: (0, 0)),    # W2
            pl.BlockSpec((1, H2),         lambda i: (0, 0)),    # b2
            pl.BlockSpec((H2, NUM_ACTION), lambda i: (0, 0)),   # W3 (narrow head)
            pl.BlockSpec((1, NUM_ACTION), lambda i: (0, 0)),    # b3
        ],
        out_specs=pl.BlockSpec((TB, NUM_ACTION), lambda i: (i, 0)),
        compiler_params=pltpu.CompilerParams(
            dimension_semantics=("parallel",)),
    )(x, w1b, b1, w2b, b2, w3b, b3)
    return out


def init_params(key):
    """Deterministic init mimicking nn.Linear's uniform(-1/sqrt(fan_in), +)."""
    ks = jax.random.split(key, 6)

    def lin(kw, kb, fan_in, fan_out):
        bound = 1.0 / jnp.sqrt(jnp.float32(fan_in))
        w = jax.random.uniform(kw, (fan_in, fan_out), jnp.float32, -bound, bound)
        b = jax.random.uniform(kb, (1, fan_out), jnp.float32, -bound, bound)
        return w, b

    w1, b1 = lin(ks[0], ks[1], NUM_STATE, H1)
    w2, b2 = lin(ks[2], ks[3], H1, H2)
    w3, b3 = lin(ks[4], ks[5], H2, NUM_ACTION)
    return (w1, b1, w2, b2, w3, b3)


def reference_forward_f32(x, params):
    w1, b1, w2, b2, w3, b3 = params
    h1 = jnp.maximum(x @ w1 + b1, 0.0)
    h2 = jnp.maximum(h1 @ w2 + b2, 0.0)
    logits = h2 @ w3 + b3
    return jax.nn.softmax(logits, axis=1)


def reference_forward_bf16(x, params):
    """Mimics the kernel's bf16 MXU operands with f32 accumulation."""
    w1, b1, w2, b2, w3, b3 = params
    bf = jnp.bfloat16
    h1 = jnp.maximum(
        jnp.dot(x.astype(bf), w1.astype(bf), preferred_element_type=jnp.float32) + b1, 0.0)
    h2 = jnp.maximum(
        jnp.dot(h1.astype(bf), w2.astype(bf), preferred_element_type=jnp.float32) + b2, 0.0)
    logits = jnp.dot(h2.astype(bf), w3.astype(bf),
                     preferred_element_type=jnp.float32) + b3
    return jax.nn.softmax(logits, axis=1)


def _check(x, prepared, params):
    out = jax.block_until_ready(policy_forward(x, prepared))
    B = x.shape[0]
    assert out.shape == (B, NUM_ACTION)
    # Tight check against a reference using the same bf16 matmul operands
    # (remaining diff: MXU/accumulation order only).
    ref_bf16 = reference_forward_bf16(x, params)
    assert jnp.allclose(out, ref_bf16, atol=2e-3, rtol=2e-3)
    # Loose sanity check against the full-f32 PyTorch-equivalent forward.
    ref_f32 = reference_forward_f32(x, params)
    assert jnp.allclose(out, ref_f32, atol=5e-2, rtol=5e-2)
    # Rows are valid probability distributions (exact divide in-kernel).
    assert jnp.allclose(jnp.sum(out, axis=1), 1.0, atol=1e-4)
    return out


if __name__ == "__main__":
    key = jax.random.PRNGKey(0)
    kx, kp, kx2 = jax.random.split(key, 3)
    params = init_params(kp)
    prepared = prepare_params(params)

    # Small spec-consistent shape: batch=2 REINFORCE states of size 8.
    x_small = jax.random.normal(kx, (2, NUM_STATE), jnp.float32)
    _check(x_small, prepared, params)

    # Larger, non-multiple batch to exercise the multi-step grid + partial block.
    x_big = jax.random.normal(kx2, (1000, NUM_STATE), jnp.float32)
    _check(x_big, prepared, params)

    print("KERNEL_OK")
</pallas_src>

<mosaic_0001>
module attributes {stable_mosaic.version = 11 : i64} {
  func.func @policy_mlp_kernel(%arg0: i32, %arg1: memref<8x8xf32, #tpu.memory_space<vmem>>, %arg2: memref<8x128xbf16, #tpu.memory_space<vmem>>, %arg3: memref<1x128xf32, #tpu.memory_space<vmem>>, %arg4: memref<128x256xbf16, #tpu.memory_space<vmem>>, %arg5: memref<1x256xf32, #tpu.memory_space<vmem>>, %arg6: memref<256x4xbf16, #tpu.memory_space<vmem>>, %arg7: memref<1x4xf32, #tpu.memory_space<vmem>>, %arg8: memref<8x4xf32, #tpu.memory_space<vmem>>) attributes {dimension_semantics = [#tpu.dimension_semantics<parallel>], iteration_bounds = array<i64: 1>, scalar_prefetch = 0 : i64, scratch_operands = 0 : i64, tpu.core_type = #tpu.core_type<tc>, window_params = [{transform_indices = @transform_0, window_bounds = array<i64: 8, 8>}, {pipeline_mode = #tpu.pipeline_mode<synchronous>, transform_indices = @transform_1, window_bounds = array<i64: 8, 128>}, {pipeline_mode = #tpu.pipeline_mode<synchronous>, transform_indices = @transform_2, window_bounds = array<i64: 1, 128>}, {pipeline_mode = #tpu.pipeline_mode<synchronous>, transform_indices = @transform_3, window_bounds = array<i64: 128, 256>}, {pipeline_mode = #tpu.pipeline_mode<synchronous>, transform_indices = @transform_4, window_bounds = array<i64: 1, 256>}, {pipeline_mode = #tpu.pipeline_mode<synchronous>, transform_indices = @transform_5, window_bounds = array<i64: 256, 4>}, {pipeline_mode = #tpu.pipeline_mode<synchronous>, transform_indices = @transform_6, window_bounds = array<i64: 1, 4>}, {transform_indices = @transform_7, window_bounds = array<i64: 8, 4>}]} {
    %c0 = arith.constant 0 : index
    %c0_0 = arith.constant 0 : index
    %0 = vector.load %arg1[%c0, %c0_0] : memref<8x8xf32, #tpu.memory_space<vmem>>, vector<8x8xf32>
    %1 = arith.truncf %0 : vector<8x8xf32> to vector<8x8xbf16>
    %c0_1 = arith.constant 0 : index
    %c0_2 = arith.constant 0 : index
    %2 = vector.load %arg2[%c0_1, %c0_2] : memref<8x128xbf16, #tpu.memory_space<vmem>>, vector<8x128xbf16>
    %cst = arith.constant dense<0.000000e+00> : vector<8x128xf32>
    %3 = tpu.matmul %1, %2, %cst {dimension_numbers = #tpu.dot_dimension_numbers<[1], [0], [0], [1], [0, 0, 1, 1], [], []>} : vector<8x8xbf16>, vector<8x128xbf16>, vector<8x128xf32> -> vector<8x128xf32>
    %c0_3 = arith.constant 0 : index
    %c0_4 = arith.constant 0 : index
    %4 = vector.load %arg3[%c0_3, %c0_4] : memref<1x128xf32, #tpu.memory_space<vmem>>, vector<1x128xf32>
    %5 = vector.broadcast %4 : vector<1x128xf32> to vector<8x128xf32>
    %6 = arith.addf %3, %5 : vector<8x128xf32>
    %cst_5 = arith.constant 0.000000e+00 : f32
    %7 = vector.broadcast %cst_5 : f32 to vector<8x128xf32>
    %8 = arith.maximumf %6, %7 : vector<8x128xf32>
    %9 = arith.truncf %8 : vector<8x128xf32> to vector<8x128xbf16>
    %c0_6 = arith.constant 0 : index
    %c0_7 = arith.constant 0 : index
    %10 = vector.load %arg4[%c0_6, %c0_7] : memref<128x256xbf16, #tpu.memory_space<vmem>>, vector<128x256xbf16>
    %cst_8 = arith.constant dense<0.000000e+00> : vector<8x256xf32>
    %11 = tpu.matmul %9, %10, %cst_8 {dimension_numbers = #tpu.dot_dimension_numbers<[1], [0], [0], [1], [0, 0, 1, 1], [], []>} : vector<8x128xbf16>, vector<128x256xbf16>, vector<8x256xf32> -> vector<8x256xf32>
    %c0_9 = arith.constant 0 : index
    %c0_10 = arith.constant 0 : index
    %12 = vector.load %arg5[%c0_9, %c0_10] : memref<1x256xf32, #tpu.memory_space<vmem>>, vector<1x256xf32>
    %13 = vector.broadcast %12 : vector<1x256xf32> to vector<8x256xf32>
    %14 = arith.addf %11, %13 : vector<8x256xf32>
    %cst_11 = arith.constant 0.000000e+00 : f32
    %15 = vector.broadcast %cst_11 : f32 to vector<8x256xf32>
    %16 = arith.maximumf %14, %15 : vector<8x256xf32>
    %17 = arith.truncf %16 : vector<8x256xf32> to vector<8x256xbf16>
    %c0_12 = arith.constant 0 : index
    %c0_13 = arith.constant 0 : index
    %18 = vector.load %arg6[%c0_12, %c0_13] : memref<256x4xbf16, #tpu.memory_space<vmem>>, vector<256x4xbf16>
    %cst_14 = arith.constant dense<0.000000e+00> : vector<8x4xf32>
    %19 = tpu.matmul %17, %18, %cst_14 {dimension_numbers = #tpu.dot_dimension_numbers<[1], [0], [0], [1], [0, 0, 1, 1], [], []>} : vector<8x256xbf16>, vector<256x4xbf16>, vector<8x4xf32> -> vector<8x4xf32>
    %c0_15 = arith.constant 0 : index
    %c0_16 = arith.constant 0 : index
    %20 = vector.load %arg7[%c0_15, %c0_16] : memref<1x4xf32, #tpu.memory_space<vmem>>, vector<1x4xf32>
    %21 = vector.broadcast %20 : vector<1x4xf32> to vector<8x4xf32>
    %22 = arith.addf %19, %21 : vector<8x4xf32>
    %cst_17 = arith.constant dense<0xFF800000> : vector<8xf32>
    %23 = vector.multi_reduction <maximumf>, %22, %cst_17 [1] : vector<8x4xf32> to vector<8xf32>
    %24 = vector.shape_cast %23 : vector<8xf32> to vector<8x1xf32>
    %25 = vector.broadcast %24 : vector<8x1xf32> to vector<8x4xf32>
    %26 = arith.subf %22, %25 : vector<8x4xf32>
    %27 = math.exp %26 : vector<8x4xf32>
    %cst_18 = arith.constant dense<0.000000e+00> : vector<8xf32>
    %28 = vector.multi_reduction <add>, %27, %cst_18 [1] : vector<8x4xf32> to vector<8xf32>
    %29 = vector.shape_cast %28 : vector<8xf32> to vector<8x1xf32>
    %30 = vector.broadcast %29 : vector<8x1xf32> to vector<8x4xf32>
    %31 = arith.divf %27, %30 : vector<8x4xf32>
    %c0_19 = arith.constant 0 : index
    %c0_20 = arith.constant 0 : index
    %32 = vector.load %arg8[%c0_19, %c0_20] : memref<8x4xf32, #tpu.memory_space<vmem>>, vector<8x4xf32>
    tpu.vector_store %arg8[%c0_19, %c0_20], %31 {strides = array<i32>} : memref<8x4xf32, #tpu.memory_space<vmem>>, vector<8x4xf32>,
    return
  }
  func.func @transform_0(%arg0: i32) -> (i32, i32) {
    %c0_i32 = arith.constant 0 : i32
    %c0_i32_0 = arith.constant 0 : i32
    return %arg0, %c0_i32 : i32, i32
  }
  func.func @transform_1(%arg0: i32) -> (i32, i32) {
    %c0_i32 = arith.constant 0 : i32
    %c0_i32_0 = arith.constant 0 : i32
    %c0_i32_1 = arith.constant 0 : i32
    return %c0_i32, %c0_i32_0 : i32, i32
  }
  func.func @transform_2(%arg0: i32) -> (i32, i32) {
    %c0_i32 = arith.constant 0 : i32
    %c0_i32_0 = arith.constant 0 : i32
    %c0_i32_1 = arith.constant 0 : i32
    return %c0_i32, %c0_i32_0 : i32, i32
  }
  func.func @transform_3(%arg0: i32) -> (i32, i32) {
    %c0_i32 = arith.constant 0 : i32
    %c0_i32_0 = arith.constant 0 : i32
    %c0_i32_1 = arith.constant 0 : i32
    return %c0_i32, %c0_i32_0 : i32, i32
  }
  func.func @transform_4(%arg0: i32) -> (i32, i32) {
    %c0_i32 = arith.constant 0 : i32
    %c0_i32_0 = arith.constant 0 : i32
    %c0_i32_1 = arith.constant 0 : i32
    return %c0_i32, %c0_i32_0 : i32, i32
  }
  func.func @transform_5(%arg0: i32) -> (i32, i32) {
    %c0_i32 = arith.constant 0 : i32
    %c0_i32_0 = arith.constant 0 : i32
    %c0_i32_1 = arith.constant 0 : i32
    return %c0_i32, %c0_i32_0 : i32, i32
  }
  func.func @transform_6(%arg0: i32) -> (i32, i32) {
    %c0_i32 = arith.constant 0 : i32
    %c0_i32_0 = arith.constant 0 : i32
    %c0_i32_1 = arith.constant 0 : i32
    return %c0_i32, %c0_i32_0 : i32, i32
  }
  func.func @transform_7(%arg0: i32) -> (i32, i32) {
    %c0_i32 = arith.constant 0 : i32
    %c0_i32_0 = arith.constant 0 : i32
    return %arg0, %c0_i32 : i32, i32
  }
}

</mosaic_0001>

<llo_original>
// kernel: policy_forward.1
$region0: #{policy_forward.1}
  #allocation0 [shape = 'u32[]', space=smem, size = 0x4, offset = 0x4, fixed_abs, tag = 'smem constant byte address 0x4 - core index']
  #allocation1 [shape = 'u32[144,128]{1,0:T(1,128)}', space=vmem, size = 0x12000, scoped, tag = 'internal scratch']
  %s0 = inlined_call_operand.vmem [shape: f32[2,8], index: 0, kind: input, shape index: {}]
  %s1 = inlined_call_operand.vmem [shape: bf16[8,128], index: 1, kind: input, shape index: {}]
  %s2 = inlined_call_operand.vmem [shape: f32[1,128], index: 2, kind: input, shape index: {}]
  %s3 = inlined_call_operand.vmem [shape: bf16[128,256], index: 3, kind: input, shape index: {}]
  %s4 = inlined_call_operand.vmem [shape: f32[1,256], index: 4, kind: input, shape index: {}]
  %s5 = inlined_call_operand.vmem [shape: bf16[256,4], index: 5, kind: input, shape index: {}]
  %s6 = inlined_call_operand.vmem [shape: f32[1,4], index: 6, kind: input, shape index: {}]
  %s7 = inlined_call_operand.hbm [shape: f32[2,4], index: 7, kind: output, shape index: {}]
  %s8 = sld [smem:[#allocation0]]
  $region38: #{policy_forward.1} parent=0
    _
  %s10 = ssub.s32 1, %s8
  %s11 = scalar_select 0, %s10, %s8
  $region1: #{policy_forward.1} parent=0
    #allocation2 [shape = 'u8[4096]{0}', space=vmem, size = 0x1000, scoped, tag = 'output window, operand 0, single buffered']
    #allocation3 [shape = 's32[1]{0}', space=sflag, size = 0x4, scoped, tag = 'scoped memory for policy_forward.1']
    %12 = vsyncpa [#allocation3], 0
    // Predicated region
    $region2: #{policy_forward.1} parent=1 // pred_check
      _
    $region3: #{policy_forward.1} parent=1 // pred_check_branch
      %14 = sbr.rel (0) target = $region5
    $region4: #{policy_forward.1} parent=1 // pred_region
      _
    $region5: #{policy_forward.1} parent=1 // pred_fallthru
      _
    // Predicated region
    $region6: #{policy_forward.1} parent=1 // pred_check
      _
    $region7: #{policy_forward.1} parent=1 // pred_check_branch
      %16 = sbr.rel (0) target = $region9
    $region8: #{policy_forward.1} parent=1 // pred_region
      _
    $region9: #{policy_forward.1} parent=1 // pred_fallthru
      _
    // Predicated region
    $region10: #{policy_forward.1} parent=1 // pred_check
      _
    $region11: #{policy_forward.1} parent=1 // pred_check_branch
      %18 = sbr.rel (0) target = $region13
    $region12: #{policy_forward.1} parent=1 // pred_region
      _
    $region13: #{policy_forward.1} parent=1 // pred_fallthru
      _
    // Predicated region
    $region14: #{policy_forward.1} parent=1 // pred_check
      _
    $region15: #{policy_forward.1} parent=1 // pred_check_branch
      %20 = sbr.rel (0) target = $region17
    $region16: #{policy_forward.1} parent=1 // pred_region
      _
    $region17: #{policy_forward.1} parent=1 // pred_fallthru
      _
    // Predicated region
    $region18: #{policy_forward.1} parent=1 // pred_check
      _
    $region19: #{policy_forward.1} parent=1 // pred_check_branch
      %22 = sbr.rel (0) target = $region21
    $region20: #{policy_forward.1} parent=1 // pred_region
      _
    $region21: #{policy_forward.1} parent=1 // pred_fallthru
      _
    // Predicated region
    $region22: #{policy_forward.1} parent=1 // pred_check
      _
    $region23: #{policy_forward.1} parent=1 // pred_check_branch
      %24 = sbr.rel (0) target = $region25
    $region24: #{policy_forward.1} parent=1 // pred_region
      _
    $region25: #{policy_forward.1} parent=1 // pred_fallthru
      _
    // Predicated region
    $region26: #{policy_forward.1} parent=1 // pred_check
      _
    $region27: #{policy_forward.1} parent=1 // pred_check_branch
      %26 = sbr.rel (0) target = $region29
    $region28: #{policy_forward.1} parent=1 // pred_region
      _
    $region29: #{policy_forward.1} parent=1 // pred_fallthru
      _
    %v28 = vld [vmem:[%s0] sm:$0xff]
    %v29 = vpack.c.bf16 %v28, %v28
    %v30 = vld [vmem:[%s1] sm:$0xf]
    %v31 = vld [vmem:[%s2] sm:$0x1]
    %v33 = vlaneseq
    %v34 = vshrl.u32 %v33, 7
    %v35 = vsub.s32 0, %v34
    %v36 = vrot.slane %v31, %v35
    %vm38 = vcmask 64512
    %v40 = vsel %vm38, %v29, 0
    %vm42 = vcmask 1043456
    %v44 = vsel %vm42, %v30, 0
    %46 = vmatprep.subr.bf16.mxu0 0
    %47 = vmatpush1.bf16.msra.mxu0 %v44
    %48 = vmatprep.subr.bf16.mxu0 0
    %49 = vmatpush1.bf16.msra.mxu0 0
    %50 = vmatprep.subr.bf16.mxu0 0
    %51 = vmatpush1.bf16.msra.mxu0 0
    %52 = vmatprep.subr.bf16.mxu0 0
    %53 = vmatpush1.bf16.msra.mxu0 0
    %54 = vmatprep.subr.bf16.mxu0 0
    %55 = vmatpush1.bf16.msra.mxu0 0
    %56 = vmatprep.subr.bf16.mxu0 0
    %57 = vmatpush1.bf16.msra.mxu0 0
    %58 = vmatprep.subr.bf16.mxu0 0
    %59 = vmatpush1.bf16.msra.mxu0 0
    %60 = vmatprep.subr.bf16.mxu0 0
    %61 = vmatpush1.bf16.msra.mxu0 0
    %62 = vmatprep.subr.bf16.mxu0 0
    %63 = vmatpush1.bf16.msra.mxu0 0
    %64 = vmatprep.subr.bf16.mxu0 0
    %65 = vmatpush1.bf16.msra.mxu0 0
    %66 = vmatprep.subr.bf16.mxu0 0
    %67 = vmatpush1.bf16.msra.mxu0 0
    %68 = vmatprep.subr.bf16.mxu0 0
    %69 = vmatpush1.bf16.msra.mxu0 0
    %70 = vmatprep.subr.bf16.mxu0 0
    %71 = vmatpush1.bf16.msra.mxu0 0
    %72 = vmatprep.subr.bf16.mxu0 0
    %73 = vmatpush1.bf16.msra.mxu0 0
    %74 = vmatprep.subr.bf16.mxu0 0
    %75 = vmatpush1.bf16.msra.mxu0 0
    %76 = vmatprep.subr.bf16.mxu0 0
    %77 = vmatpush1.bf16.msra.mxu0 0
    %78 = vmatprep.mubr.bf16.mxu0 0
    %79 = vmatmul.mubr.bf16.gmra.mrb[0].mxu0 %v40
    %v80 = vpop.f32.mrb[0].mxu0
    %v81 = vadd.f32 %v36, %v80
    %v82 = vpop.f32.mrb[0].mxu0
    %v83 = vpop.f32.mrb[0].mxu0
    %v84 = vpop.f32.mrb[0].mxu0
    %85 = vdwg.mxu0
    %v86 = vmax.f32 %v81, 0.0
    %v87 = vpack.c.bf16 %v86, %v86
    %v88 = vld [vmem:[%s3] sm:$0xff]
    %v89 = vld [vmem:[%s3 + $0x8] sm:$0xff]
    %v90 = vld [vmem:[%s3 + $0x10] sm:$0xff]
    %v91 = vld [vmem:[%s3 + $0x18] sm:$0xff]
    %v92 = vld [vmem:[%s3 + $0x20] sm:$0xff]
    %v93 = vld [vmem:[%s3 + $0x28] sm:$0xff]
    %v94 = vld [vmem:[%s3 + $0x30] sm:$0xff]
    %v95 = vld [vmem:[%s3 + $0x38] sm:$0xff]
    %v96 = vld [vmem:[%s3 + $0x40] sm:$0xff]
    %v97 = vld [vmem:[%s3 + $0x48] sm:$0xff]
    %v98 = vld [vmem:[%s3 + $0x50] sm:$0xff]
    %v99 = vld [vmem:[%s3 + $0x58] sm:$0xff]
    %v100 = vld [vmem:[%s3 + $0x60] sm:$0xff]
    %v101 = vld [vmem:[%s3 + $0x68] sm:$0xff]
    %v102 = vld [vmem:[%s3 + $0x70] sm:$0xff]
    %v103 = vld [vmem:[%s3 + $0x78] sm:$0xff]
    %v104 = vld [vmem:[%s4] sm:$0x3]
    %v106 = vlaneseq
    %v107 = vshrl.u32 %v106, 7
    %v108 = vsub.s32 0, %v107
    %v109 = vrot.slane %v104, %v108
    %v110 = vlaneseq
    %v111 = vshrl.u32 %v110, 7
    %v112 = vsub.s32 1, %v111
    %v113 = vrot.slane %v104, %v112
    %v132 = vunpack.c.l.b16 %v88
    %v133 = vunpack.c.h.b16 %v88
    %v134 = vunpack.c.l.b16 %v89
    %v135 = vunpack.c.h.b16 %v89
    %v136 = vunpack.c.l.b16 %v90
    %v137 = vunpack.c.h.b16 %v90
    %v138 = vunpack.c.l.b16 %v91
    %v139 = vunpack.c.h.b16 %v91
    %v140 = vunpack.c.l.b16 %v92
    %v141 = vunpack.c.h.b16 %v92
    %v142 = vunpack.c.l.b16 %v93
    %v143 = vunpack.c.h.b16 %v93
    %v144 = vunpack.c.l.b16 %v94
    %v145 = vunpack.c.h.b16 %v94
    %v146 = vunpack.c.l.b16 %v95
    %v147 = vunpack.c.h.b16 %v95
    %v148 = vunpack.c.l.b16 %v96
    %v149 = vunpack.c.h.b16 %v96
    %v150 = vunpack.c.l.b16 %v97
    %v151 = vunpack.c.h.b16 %v97
    %v152 = vunpack.c.l.b16 %v98
    %v153 = vunpack.c.h.b16 %v98
    %v154 = vunpack.c.l.b16 %v99
    %v155 = vunpack.c.h.b16 %v99
    %v156 = vunpack.c.l.b16 %v100
    %v157 = vunpack.c.h.b16 %v100
    %v158 = vunpack.c.l.b16 %v101
    %v159 = vunpack.c.h.b16 %v101
    %v160 = vunpack.c.l.b16 %v102
    %v161 = vunpack.c.h.b16 %v102
    %v162 = vunpack.c.l.b16 %v103
    %v163 = vunpack.c.h.b16 %v103
    %v164 = vpack.c.b16 %v134, %v132
    %v165 = vpack.c.b16 %v135, %v133
    %v166 = vpack.c.b16 %v138, %v136
    %v167 = vpack.c.b16 %v139, %v137
    %v168 = vpack.c.b16 %v142, %v140
    %v169 = vpack.c.b16 %v143, %v141
    %v170 = vpack.c.b16 %v146, %v144
    %v171 = vpack.c.b16 %v147, %v145
    %v172 = vpack.c.b16 %v150, %v148
    %v173 = vpack.c.b16 %v151, %v149
    %v174 = vpack.c.b16 %v154, %v152
    %v175 = vpack.c.b16 %v155, %v153
    %v176 = vpack.c.b16 %v158, %v156
    %v177 = vpack.c.b16 %v159, %v157
    %v178 = vpack.c.b16 %v162, %v160
    %v179 = vpack.c.b16 %v163, %v161
    %196 = vmatprep.subr.bf16.mxu0 %v165
    %197 = vmatpush1.bf16.msra.mxu0 %v164
    %198 = vmatprep.subr.bf16.mxu0 %v167
    %199 = vmatpush1.bf16.msra.mxu0 %v166
    %200 = vmatprep.subr.bf16.mxu0 %v169
    %201 = vmatpush1.bf16.msra.mxu0 %v168
    %202 = vmatprep.subr.bf16.mxu0 %v171
    %203 = vmatpush1.bf16.msra.mxu0 %v170
    %204 = vmatprep.subr.bf16.mxu0 %v173
    %205 = vmatpush1.bf16.msra.mxu0 %v172
    %206 = vmatprep.subr.bf16.mxu0 %v175
    %207 = vmatpush1.bf16.msra.mxu0 %v174
    %208 = vmatprep.subr.bf16.mxu0 %v177
    %209 = vmatpush1.bf16.msra.mxu0 %v176
    %210 = vmatprep.subr.bf16.mxu0 %v179
    %211 = vmatpush1.bf16.msra.mxu0 %v178
    %212 = vmatprep.subr.bf16.mxu0 0
    %213 = vmatpush1.bf16.msra.mxu0 0
    %214 = vmatprep.subr.bf16.mxu0 0
    %215 = vmatpush1.bf16.msra.mxu0 0
    %216 = vmatprep.subr.bf16.mxu0 0
    %217 = vmatpush1.bf16.msra.mxu0 0
    %218 = vmatprep.subr.bf16.mxu0 0
    %219 = vmatpush1.bf16.msra.mxu0 0
    %220 = vmatprep.subr.bf16.mxu0 0
    %221 = vmatpush1.bf16.msra.mxu0 0
    %222 = vmatprep.subr.bf16.mxu0 0
    %223 = vmatpush1.bf16.msra.mxu0 0
    %224 = vmatprep.subr.bf16.mxu0 0
    %225 = vmatpush1.bf16.msra.mxu0 0
    %226 = vmatprep.subr.bf16.mxu0 0
    %227 = vmatpush1.bf16.msra.mxu0 0
    %228 = vmatprep.mubr.bf16.mxu0 0
    %229 = vmatmul.mubr.bf16.gmra.mrb[0].mxu0 %v87
    %v230 = vpop.f32.mrb[0].mxu0
    %v231 = vadd.f32 %v109, %v230
    %v232 = vpop.f32.mrb[0].mxu0
    %v233 = vadd.f32 %v113, %v232
    %v234 = vpop.f32.mrb[0].mxu0
    %v235 = vpop.f32.mrb[0].mxu0
    %236 = vdwg.mxu0
    %v237 = vmax.f32 %v231, 0.0
    %v238 = vmax.f32 %v233, 0.0
    %v239 = vpack.c.bf16 %v237, %v237
    %v240 = vpack.c.bf16 %v238, %v238
    %v241 = vld [vmem:[%s5] sm:$0xf]
    %v242 = vld [vmem:[%s5 + $0x4] sm:$0xf]
    %v243 = vld [vmem:[%s5 + $0x8] sm:$0xf]
    %v244 = vld [vmem:[%s5 + $0xc] sm:$0xf]
    %v245 = vld [vmem:[%s5 + $0x10] sm:$0xf]
    %v246 = vld [vmem:[%s5 + $0x14] sm:$0xf]
    %v247 = vld [vmem:[%s5 + $0x18] sm:$0xf]
    %v248 = vld [vmem:[%s5 + $0x1c] sm:$0xf]
    %v249 = vld [vmem:[%s5 + $0x20] sm:$0xf]
    %v250 = vld [vmem:[%s5 + $0x24] sm:$0xf]
    %v251 = vld [vmem:[%s5 + $0x28] sm:$0xf]
    %v252 = vld [vmem:[%s5 + $0x2c] sm:$0xf]
    %v253 = vld [vmem:[%s5 + $0x30] sm:$0xf]
    %v254 = vld [vmem:[%s5 + $0x34] sm:$0xf]
    %v255 = vld [vmem:[%s5 + $0x38] sm:$0xf]
    %v256 = vld [vmem:[%s5 + $0x3c] sm:$0xf]
    %v257 = vld [vmem:[%s5 + $0x40] sm:$0xf]
    %v258 = vld [vmem:[%s5 + $0x44] sm:$0xf]
    %v259 = vld [vmem:[%s5 + $0x48] sm:$0xf]
    %v260 = vld [vmem:[%s5 + $0x4c] sm:$0xf]
    %v261 = vld [vmem:[%s5 + $0x50] sm:$0xf]
    %v262 = vld [vmem:[%s5 + $0x54] sm:$0xf]
    %v263 = vld [vmem:[%s5 + $0x58] sm:$0xf]
    %v264 = vld [vmem:[%s5 + $0x5c] sm:$0xf]
    %v265 = vld [vmem:[%s5 + $0x60] sm:$0xf]
    %v266 = vld [vmem:[%s5 + $0x64] sm:$0xf]
    %v267 = vld [vmem:[%s5 + $0x68] sm:$0xf]
    %v268 = vld [vmem:[%s5 + $0x6c] sm:$0xf]
    %v269 = vld [vmem:[%s5 + $0x70] sm:$0xf]
    %v270 = vld [vmem:[%s5 + $0x74] sm:$0xf]
    %v271 = vld [vmem:[%s5 + $0x78] sm:$0xf]
    %v272 = vld [vmem:[%s5 + $0x7c] sm:$0xf]
    %v273 = vld [vmem:[%s6] sm:$0x1]
    %v275 = vlaneseq
    %v276 = vshrl.u32 %v275, 7
    %v277 = vsub.s32 0, %v276
    %v278 = vrot.slane %v273, %v277
    %v312 = vunpack.c.l.b16 %v241
    %v313 = vunpack.c.l.b16 %v242
    %v314 = vunpack.c.l.b16 %v243
    %v315 = vunpack.c.l.b16 %v244
    %v316 = vunpack.c.l.b16 %v245
    %v317 = vunpack.c.l.b16 %v246
    %v318 = vunpack.c.l.b16 %v247
    %v319 = vunpack.c.l.b16 %v248
    %v320 = vunpack.c.l.b16 %v249
    %v321 = vunpack.c.l.b16 %v250
    %v322 = vunpack.c.l.b16 %v251
    %v323 = vunpack.c.l.b16 %v252
    %v324 = vunpack.c.l.b16 %v253
    %v325 = vunpack.c.l.b16 %v254
    %v326 = vunpack.c.l.b16 %v255
    %v327 = vunpack.c.l.b16 %v256
    %v328 = vunpack.c.l.b16 %v257
    %v329 = vunpack.c.l.b16 %v258
    %v330 = vunpack.c.l.b16 %v259
    %v331 = vunpack.c.l.b16 %v260
    %v332 = vunpack.c.l.b16 %v261
    %v333 = vunpack.c.l.b16 %v262
    %v334 = vunpack.c.l.b16 %v263
    %v335 = vunpack.c.l.b16 %v264
    %v336 = vunpack.c.l.b16 %v265
    %v337 = vunpack.c.l.b16 %v266
    %v338 = vunpack.c.l.b16 %v267
    %v339 = vunpack.c.l.b16 %v268
    %v340 = vunpack.c.l.b16 %v269
    %v341 = vunpack.c.l.b16 %v270
    %v342 = vunpack.c.l.b16 %v271
    %v343 = vunpack.c.l.b16 %v272
    %v344 = vpack.c.b16 %v313, %v312
    %v345 = vpack.c.b16 %v315, %v314
    %v346 = vpack.c.b16 %v317, %v316
    %v347 = vpack.c.b16 %v319, %v318
    %v348 = vpack.c.b16 %v321, %v320
    %v349 = vpack.c.b16 %v323, %v322
    %v350 = vpack.c.b16 %v325, %v324
    %v351 = vpack.c.b16 %v327, %v326
    %v352 = vpack.c.b16 %v329, %v328
    %v353 = vpack.c.b16 %v331, %v330
    %v354 = vpack.c.b16 %v333, %v332
    %v355 = vpack.c.b16 %v335, %v334
    %v356 = vpack.c.b16 %v337, %v336
    %v357 = vpack.c.b16 %v339, %v338
    %v358 = vpack.c.b16 %v341, %v340
    %v359 = vpack.c.b16 %v343, %v342
    %376 = vmatprep.subr.bf16.mxu0 0
    %377 = vmatpush1.bf16.msra.mxu0 %v344
    %378 = vmatprep.subr.bf16.mxu0 0
    %379 = vmatpush1.bf16.msra.mxu0 %v345
    %380 = vmatprep.subr.bf16.mxu0 0
    %381 = vmatpush1.bf16.msra.mxu0 %v346
    %382 = vmatprep.subr.bf16.mxu0 0
    %383 = vmatpush1.bf16.msra.mxu0 %v347
    %384 = vmatprep.subr.bf16.mxu0 0
    %385 = vmatpush1.bf16.msra.mxu0 %v348
    %386 = vmatprep.subr.bf16.mxu0 0
    %387 = vmatpush1.bf16.msra.mxu0 %v349
    %388 = vmatprep.subr.bf16.mxu0 0
    %389 = vmatpush1.bf16.msra.mxu0 %v350
    %390 = vmatprep.subr.bf16.mxu0 0
    %391 = vmatpush1.bf16.msra.mxu0 %v351
    %392 = vmatprep.subr.bf16.mxu0 0
    %393 = vmatpush1.bf16.msra.mxu0 %v352
    %394 = vmatprep.subr.bf16.mxu0 0
    %395 = vmatpush1.bf16.msra.mxu0 %v353
    %396 = vmatprep.subr.bf16.mxu0 0
    %397 = vmatpush1.bf16.msra.mxu0 %v354
    %398 = vmatprep.subr.bf16.mxu0 0
    %399 = vmatpush1.bf16.msra.mxu0 %v355
    %400 = vmatprep.subr.bf16.mxu0 0
    %401 = vmatpush1.bf16.msra.mxu0 %v356
    %402 = vmatprep.subr.bf16.mxu0 0
    %403 = vmatpush1.bf16.msra.mxu0 %v357
    %404 = vmatprep.subr.bf16.mxu0 0
    %405 = vmatpush1.bf16.msra.mxu0 %v358
    %406 = vmatprep.subr.bf16.mxu0 0
    %407 = vmatpush1.bf16.msra.mxu0 %v359
    %408 = vmatprep.mubr.bf16.mxu0 %v240
    %409 = vmatmul.mubr.bf16.gmra.mrb[0].mxu0 %v239
    %v410 = vpop.f32.mrb[0].mxu0
    %v411 = vadd.f32 %v278, %v410
    %v412 = vpop.f32.mrb[0].mxu0
    %v413 = vpop.f32.mrb[0].mxu0
    %v414 = vpop.f32.mrb[0].mxu0
    %415 = vdwg.mxu0
    %vm416 = vcmask 31744
    %v417 = vsel %vm416, %v411, -inf
    %418 = vmax.xlane.f32.xlu0 %v417
    %v419 = vpop.xlane.xlu0 %418
    %v420 = vsub.f32 %v411, %v419
    %v421 = vmul.f32 %v420, 1.442695
    %v422 = vpow.pop %v421
    %v423 = vsel %vm416, %v422, 0.0
    %424 = vadd.xlane.f32.xlu0 %v423
    %v425 = vpop.xlane.xlu0 %424
    %v426 = vrcp.pop %v425
    %v427 = vmul.f32 %v422, %v426
    %428 = vst.msk [vmem:[#allocation2] sm:$0xff] %vm416, %v427
    // Predicated region
    $region30: #{policy_forward.1} parent=1 // pred_check
      _
    $region31: #{policy_forward.1} parent=1 // pred_check_branch
      %430 = sbr.rel (0) target = $region33
    $region32: #{policy_forward.1} parent=1 // pred_region
      %s432 = ssub.s32 128, 32
      %433 = vsyncadd [#allocation3], %s432
      %s434 = sshll.u32 [#allocation2], 4
      %s435 = int_to_ptr.vmem [resolvable:$true] %s434
      %440 = dma.vmem_to_hbm [thread:$0]  %s435, 32, %s7, [#allocation3], 32, 32, 2
    $region33: #{policy_forward.1} parent=1 // pred_fallthru
      _
    // Predicated region
    $region34: #{policy_forward.1} parent=1 // pred_check
      _
    $region35: #{policy_forward.1} parent=1 // pred_check_branch
      %442 = sbr.rel (0) target = $region37
    $region36: #{policy_forward.1} parent=1 // pred_region
      %443 = dma.done [#allocation3], 128
    $region37: #{policy_forward.1} parent=1 // pred_fallthru
      _
    %444 = vsyncpa [#allocation3], 1

</llo_original>
